<compile_context>
chip_gen: v5e
topology: v5e:2x2
jax: 0.10.0
libtpu: 0.0.40
codegen_flags: <defaults>
</compile_context>

<pallas_src>
import jax
import jax.numpy as jnp
from jax.experimental import pallas as pl
from jax.experimental.pallas import tpu as pltpu

# ---- config (mirrors SegRNN.__init__) ----
SEQ_LEN, PRED_LEN = 16, 8
ENC_IN, C_OUT = 4, 4
D_MODEL = 32
SEG_LEN = 4
SEG_NUM_X = SEQ_LEN // SEG_LEN   # 4
SEG_NUM_Y = PRED_LEN // SEG_LEN  # 2
BATCH = 2
N_ROWS = BATCH * ENC_IN          # 8 (multiple of 8 -> all row slices sublane-aligned)


def _segrnn_fused_kernel(xseg_ref, wemb_ref, wpack_ref, bpack_ref, gidec_ref,
                         wblk_ref, o_ref):
    """Fused: valueEmbedding + GRU encode + batched positional GRU decode +
    predict head + block-diagonal channel projection.  Everything in VMEM."""
    D = D_MODEL
    N = N_ROWS

    # --- unpack (all slices are sublane-aligned row views / lane-0 column views) ---
    wpack = wpack_ref[...]                     # [3D, 3D]
    w_ih = wpack[:D, :]                        # [D, 3D]
    w_hh = wpack[D:2 * D, :]                   # [D, 3D]
    w_pred = wpack[2 * D:, :SEG_LEN]           # [D, seg_len]
    bpack = bpack_ref[...]                     # [4, 3D]
    b_ih = bpack[0:1, :]                       # [1, 3D]
    b_hh = bpack[1:2, :]                       # [1, 3D]
    b_emb = bpack[2:3, :D]                     # [1, D]
    b_pred = bpack[3:4, :SEG_LEN]              # [1, seg_len]

    # --- value embedding + non-recurrent input-gate matmul for ALL segments ---
    emb_all = jnp.maximum(
        jnp.dot(xseg_ref[...], wemb_ref[...],
                preferred_element_type=jnp.float32) + b_emb, 0.0)        # [sx*N, D]
    gi_all = jnp.dot(emb_all, w_ih, preferred_element_type=jnp.float32) + b_ih

    # --- recurrent encode: only h @ W_hh remains on the serial path ---
    b_hh_rows = jnp.broadcast_to(b_hh, (N, 3 * D))        # hoisted broadcast
    h = jnp.zeros((N, D), dtype=jnp.float32)
    for t in range(SEG_NUM_X):                            # static unrolled loop
        gi = gi_all[t * N:(t + 1) * N, :]                 # 8-row aligned free view
        gh = jnp.dot(h, w_hh, preferred_element_type=jnp.float32) + b_hh_rows
        r = jax.nn.sigmoid(gi[:, :D] + gh[:, :D])         # PyTorch gate order [r|z|n]
        z = jax.nn.sigmoid(gi[:, D:2 * D] + gh[:, D:2 * D])
        n = jnp.tanh(gi[:, 2 * D:] + r * gh[:, 2 * D:])
        h = (1.0 - z) * n + z * h

    # --- decoder: input gates precomputed at init; ONE batched GRU cell + ONE
    #     predict matmul over seg_num_y (rows ordered (s, b, c)) ---
    h_rep = jnp.concatenate([h] * SEG_NUM_Y, axis=0)      # [sy*N, D]
    gi_d = gidec_ref[...]                                 # [sy*N, 3D] (param-only)
    gh_d = jnp.dot(h_rep, w_hh, preferred_element_type=jnp.float32) + b_hh
    r = jax.nn.sigmoid(gi_d[:, :D] + gh_d[:, :D])
    z = jax.nn.sigmoid(gi_d[:, D:2 * D] + gh_d[:, D:2 * D])
    n = jnp.tanh(gi_d[:, 2 * D:] + r * gh_d[:, 2 * D:])
    hy = (1.0 - z) * n + z * h_rep                        # [sy*N, D]
    y_dec = jnp.dot(hy, w_pred, preferred_element_type=jnp.float32) + b_pred

    # --- assemble [N, pred_len] (col = s*seg_len + l) and project channels ---
    y_full = jnp.concatenate(
        [y_dec[s * N:(s + 1) * N, :] for s in range(SEG_NUM_Y)], axis=1)  # [N, pred_len]
    # block-diagonal kron(I_B, W_proj^T) @ y_full -> [B*c_out, pred_len]
    o_ref[...] = jnp.dot(wblk_ref[...], y_full, preferred_element_type=jnp.float32)


def _full_spec(shape):
    return pl.BlockSpec(shape, lambda i: (0,) * len(shape))


def prepare_segrnn_params(params):
    """One-time, init-only packing and parameter-only precompute.

    Nothing here is re-executed per forward call: the results are passed to the
    jitted forward as plain device arrays.
    """
    D = D_MODEL
    # Sublane-stacked weight pack [W_ih; W_hh; pad(W_pred)] -> [3D, 3D]:
    # every in-kernel unpack is a row view at a multiple of 8 sublanes.
    w_pred_pad = jnp.zeros((D, 3 * D), jnp.float32).at[:, :SEG_LEN].set(params["w_pred"])
    w_pack = jnp.concatenate([params["w_ih"], params["w_hh"], w_pred_pad], axis=0)
    # One bias per row -> every in-kernel bias slice starts at lane 0.
    b_pack = jnp.zeros((4, 3 * D), jnp.float32)
    b_pack = b_pack.at[0, :].set(params["b_ih"][0])
    b_pack = b_pack.at[1, :].set(params["b_hh"][0])
    b_pack = b_pack.at[2, :D].set(params["b_emb"][0])
    b_pack = b_pack.at[3, :SEG_LEN].set(params["b_pred"][0])
    # Decoder input gates depend only on parameters: precompute once.
    # Rows ordered (s, b, c): row = s*N + b*ENC_IN + c, value [pos[s] | chan[c]].
    pe = jnp.concatenate(
        [jnp.broadcast_to(params["pos_emb"][:, None, :], (SEG_NUM_Y, ENC_IN, D // 2)),
         jnp.broadcast_to(params["channel_emb"][None, :, :], (SEG_NUM_Y, ENC_IN, D // 2))],
        axis=-1)                                                      # [sy, C, D]
    pe = jnp.broadcast_to(pe[:, None], (SEG_NUM_Y, BATCH, ENC_IN, D))
    pe = pe.reshape(SEG_NUM_Y * N_ROWS, D)
    gi_dec = pe @ params["w_ih"] + params["b_ih"]                     # [sy*N, 3D]
    # Block-diagonal channel projection kron(I_B, W_proj^T): harmless [8,8] at B=2.
    # (If batch is ever scaled, move this into the XLA epilogue instead — O(B^2).)
    w_blk = jnp.kron(jnp.eye(BATCH, dtype=jnp.float32), params["w_proj"].T)
    return {
        "w_emb": params["w_emb"],
        "w_pack": w_pack,
        "b_pack": b_pack,
        "gi_dec": gi_dec,
        "w_blk": w_blk,
        "b_proj": params["b_proj"],
    }


def segrnn_forward(x, packed):
    """Per-call path: tiny XLA prologue (norm + t-major segmentation, fuses with
    the layout transpose), one fused Pallas kernel, tiny XLA epilogue."""
    B, S, C = x.shape
    N = B * C

    # Instance norm over time (single reduction pass: mean(xc) is ~0, so skip
    # re-centering) fused with the (b,c)-row / t-major segment relayout.
    mean = jnp.mean(x, axis=1, keepdims=True)
    xc = x - mean
    var = jnp.mean(xc * xc, axis=1, keepdims=True)
    xn = xc / jnp.sqrt(var + 1e-5)
    # [B,S,C] -> [B,C,sx,seg_len] -> t-major rows [sx*N, seg_len]
    xseg = jnp.transpose(xn, (0, 2, 1)).reshape(B, C, SEG_NUM_X, SEG_LEN)
    xseg = jnp.transpose(xseg, (2, 0, 1, 3)).reshape(SEG_NUM_X * N, SEG_LEN)

    args = (xseg, packed["w_emb"], packed["w_pack"], packed["b_pack"],
            packed["gi_dec"], packed["w_blk"])
    out_t = pl.pallas_call(
        _segrnn_fused_kernel,
        grid=(1,),   # single TC pass; add a parallel row-block axis only if B*C grows (v7x)
        in_specs=[_full_spec(a.shape) for a in args],
        out_specs=_full_spec((B * C_OUT, PRED_LEN)),
        out_shape=jax.ShapeDtypeStruct((B * C_OUT, PRED_LEN), jnp.float32),
        compiler_params=pltpu.CompilerParams(dimension_semantics=("arbitrary",)),
    )(*args)

    # Final tiny relayout + projection bias (one fused XLA op on a [2,4,8] array).
    out = jnp.transpose(out_t.reshape(B, C_OUT, PRED_LEN), (0, 2, 1))
    return out + packed["b_proj"]


def segrnn_reference(x, params):
    """Pure-JAX reference mirroring the PyTorch forward exactly."""
    B, S, C = x.shape
    D = D_MODEL
    mean = jnp.mean(x, axis=1, keepdims=True)
    xc = x - mean
    var = jnp.var(xc, axis=1, keepdims=True)              # unbiased=False
    xn = xc / jnp.sqrt(var + 1e-5)
    xr = jnp.transpose(xn, (0, 2, 1)).reshape(B * C, SEG_NUM_X, SEG_LEN)
    emb = jax.nn.relu(xr @ params["w_emb"] + params["b_emb"][0])

    def gru_cell(h, xt):
        gi = xt @ params["w_ih"] + params["b_ih"][0]
        gh = h @ params["w_hh"] + params["b_hh"][0]
        r = jax.nn.sigmoid(gi[:, :D] + gh[:, :D])
        z = jax.nn.sigmoid(gi[:, D:2 * D] + gh[:, D:2 * D])
        n = jnp.tanh(gi[:, 2 * D:] + r * gh[:, 2 * D:])
        return (1.0 - z) * n + z * h

    hn = jnp.zeros((B * C, D), jnp.float32)
    for t in range(SEG_NUM_X):
        hn = gru_cell(hn, emb[:, t, :])

    pe = jnp.concatenate(
        [jnp.broadcast_to(params["pos_emb"][None, :, :], (C, SEG_NUM_Y, D // 2)),
         jnp.broadcast_to(params["channel_emb"][:, None, :], (C, SEG_NUM_Y, D // 2))],
        axis=-1).reshape(C * SEG_NUM_Y, D)
    pe = jnp.tile(pe, (B, 1))                              # [B*C*sy, D]
    h_rep = jnp.repeat(hn, SEG_NUM_Y, axis=0)              # hn.repeat(1,1,sy).view(...)
    hy = gru_cell(h_rep, pe)
    y = hy @ params["w_pred"] + params["b_pred"][0]        # [B*C*sy, seg_len]
    y = jnp.transpose(y.reshape(B, C, PRED_LEN), (0, 2, 1))
    return y @ params["w_proj"] + params["b_proj"][0]


if __name__ == "__main__":
    key = jax.random.PRNGKey(0)
    ks = jax.random.split(key, 13)
    params = {
        "w_emb": 0.1 * jax.random.normal(ks[0], (SEG_LEN, D_MODEL), jnp.float32),
        "b_emb": 0.1 * jax.random.normal(ks[1], (1, D_MODEL), jnp.float32),
        "w_ih": 0.1 * jax.random.normal(ks[2], (D_MODEL, 3 * D_MODEL), jnp.float32),
        "w_hh": 0.1 * jax.random.normal(ks[3], (D_MODEL, 3 * D_MODEL), jnp.float32),
        "b_ih": 0.1 * jax.random.normal(ks[4], (1, 3 * D_MODEL), jnp.float32),
        "b_hh": 0.1 * jax.random.normal(ks[5], (1, 3 * D_MODEL), jnp.float32),
        "pos_emb": jax.random.normal(ks[6], (SEG_NUM_Y, D_MODEL // 2), jnp.float32),
        "channel_emb": jax.random.normal(ks[7], (ENC_IN, D_MODEL // 2), jnp.float32),
        "w_pred": 0.1 * jax.random.normal(ks[8], (D_MODEL, SEG_LEN), jnp.float32),
        "b_pred": 0.1 * jax.random.normal(ks[9], (1, SEG_LEN), jnp.float32),
        "w_proj": 0.1 * jax.random.normal(ks[10], (ENC_IN, C_OUT), jnp.float32),
        "b_proj": 0.1 * jax.random.normal(ks[11], (1, C_OUT), jnp.float32),
    }
    x = jax.random.normal(ks[12], (BATCH, SEQ_LEN, ENC_IN), jnp.float32)

    # init-time packing / parameter-only precompute (runs once, outside the jit).
    packed = jax.block_until_ready(prepare_segrnn_params(params))

    forward = jax.jit(segrnn_forward)
    out = jax.block_until_ready(forward(x, packed))
    ref = segrnn_reference(x, params)

    assert out.shape == (BATCH, PRED_LEN, C_OUT), out.shape
    assert jnp.allclose(out, ref, atol=1e-4, rtol=1e-4), \
        float(jnp.max(jnp.abs(out - ref)))
    print("KERNEL_OK")
</pallas_src>

<mosaic_0001>
module attributes {stable_mosaic.version = 11 : i64} {
  func.func @_segrnn_fused_kernel(%arg0: i32, %arg1: memref<32x4xf32, #tpu.memory_space<vmem>>, %arg2: memref<4x32xf32, #tpu.memory_space<vmem>>, %arg3: memref<96x96xf32, #tpu.memory_space<vmem>>, %arg4: memref<4x96xf32, #tpu.memory_space<vmem>>, %arg5: memref<16x96xf32, #tpu.memory_space<vmem>>, %arg6: memref<8x8xf32, #tpu.memory_space<vmem>>, %arg7: memref<8x8xf32, #tpu.memory_space<vmem>>) attributes {dimension_semantics = [#tpu.dimension_semantics<arbitrary>], iteration_bounds = array<i64: 1>, scalar_prefetch = 0 : i64, scratch_operands = 0 : i64, tpu.core_type = #tpu.core_type<tc>, window_params = [{pipeline_mode = #tpu.pipeline_mode<synchronous>, transform_indices = @transform_0, window_bounds = array<i64: 32, 4>}, {pipeline_mode = #tpu.pipeline_mode<synchronous>, transform_indices = @transform_1, window_bounds = array<i64: 4, 32>}, {pipeline_mode = #tpu.pipeline_mode<synchronous>, transform_indices = @transform_2, window_bounds = array<i64: 96, 96>}, {pipeline_mode = #tpu.pipeline_mode<synchronous>, transform_indices = @transform_3, window_bounds = array<i64: 4, 96>}, {pipeline_mode = #tpu.pipeline_mode<synchronous>, transform_indices = @transform_4, window_bounds = array<i64: 16, 96>}, {pipeline_mode = #tpu.pipeline_mode<synchronous>, transform_indices = @transform_5, window_bounds = array<i64: 8, 8>}, {pipeline_mode = #tpu.pipeline_mode<synchronous>, transform_indices = @transform_6, window_bounds = array<i64: 8, 8>}]} {
    %c0 = arith.constant 0 : index
    %c0_0 = arith.constant 0 : index
    %0 = vector.load %arg3[%c0, %c0_0] : memref<96x96xf32, #tpu.memory_space<vmem>>, vector<96x96xf32>
    %1 = vector.extract_strided_slice %0 {offsets = [0, 0], sizes = [32, 96], strides = [1, 1]} : vector<96x96xf32> to vector<32x96xf32>
    %2 = vector.extract_strided_slice %0 {offsets = [32, 0], sizes = [32, 96], strides = [1, 1]} : vector<96x96xf32> to vector<32x96xf32>
    %3 = vector.extract_strided_slice %0 {offsets = [64, 0], sizes = [32, 4], strides = [1, 1]} : vector<96x96xf32> to vector<32x4xf32>
    %c0_1 = arith.constant 0 : index
    %c0_2 = arith.constant 0 : index
    %4 = vector.load %arg4[%c0_1, %c0_2] : memref<4x96xf32, #tpu.memory_space<vmem>>, vector<4x96xf32>
    %5 = vector.extract_strided_slice %4 {offsets = [0, 0], sizes = [1, 96], strides = [1, 1]} : vector<4x96xf32> to vector<1x96xf32>
    %6 = vector.extract_strided_slice %4 {offsets = [1, 0], sizes = [1, 96], strides = [1, 1]} : vector<4x96xf32> to vector<1x96xf32>
    %7 = vector.extract_strided_slice %4 {offsets = [2, 0], sizes = [1, 32], strides = [1, 1]} : vector<4x96xf32> to vector<1x32xf32>
    %8 = vector.extract_strided_slice %4 {offsets = [3, 0], sizes = [1, 4], strides = [1, 1]} : vector<4x96xf32> to vector<1x4xf32>
    %c0_3 = arith.constant 0 : index
    %c0_4 = arith.constant 0 : index
    %9 = vector.load %arg1[%c0_3, %c0_4] : memref<32x4xf32, #tpu.memory_space<vmem>>, vector<32x4xf32>
    %c0_5 = arith.constant 0 : index
    %c0_6 = arith.constant 0 : index
    %10 = vector.load %arg2[%c0_5, %c0_6] : memref<4x32xf32, #tpu.memory_space<vmem>>, vector<4x32xf32>
    %cst = arith.constant dense<0.000000e+00> : vector<32x32xf32>
    %11 = tpu.matmul %9, %10, %cst {dimension_numbers = #tpu.dot_dimension_numbers<[1], [0], [0], [1], [0, 0, 1, 1], [], []>} : vector<32x4xf32>, vector<4x32xf32>, vector<32x32xf32> -> vector<32x32xf32>
    %12 = vector.broadcast %7 : vector<1x32xf32> to vector<32x32xf32>
    %13 = arith.addf %11, %12 : vector<32x32xf32>
    %cst_7 = arith.constant 0.000000e+00 : f32
    %14 = vector.broadcast %cst_7 : f32 to vector<32x32xf32>
    %15 = arith.maximumf %13, %14 : vector<32x32xf32>
    %cst_8 = arith.constant dense<0.000000e+00> : vector<32x96xf32>
    %16 = tpu.matmul %15, %1, %cst_8 {dimension_numbers = #tpu.dot_dimension_numbers<[1], [0], [0], [1], [0, 0, 1, 1], [], []>} : vector<32x32xf32>, vector<32x96xf32>, vector<32x96xf32> -> vector<32x96xf32>
    %17 = vector.broadcast %5 : vector<1x96xf32> to vector<32x96xf32>
    %18 = arith.addf %16, %17 : vector<32x96xf32>
    %19 = vector.shape_cast %6 : vector<1x96xf32> to vector<1x96xf32>
    %20 = vector.broadcast %19 : vector<1x96xf32> to vector<8x96xf32>
    %cst_9 = arith.constant 0.000000e+00 : f32
    %21 = vector.broadcast %cst_9 : f32 to vector<8x32xf32>
    %22 = vector.extract_strided_slice %18 {offsets = [0, 0], sizes = [8, 96], strides = [1, 1]} : vector<32x96xf32> to vector<8x96xf32>
    %cst_10 = arith.constant dense<0.000000e+00> : vector<8x96xf32>
    %23 = tpu.matmul %21, %2, %cst_10 {dimension_numbers = #tpu.dot_dimension_numbers<[1], [0], [0], [1], [0, 0, 1, 1], [], []>} : vector<8x32xf32>, vector<32x96xf32>, vector<8x96xf32> -> vector<8x96xf32>
    %24 = arith.addf %23, %20 : vector<8x96xf32>
    %25 = vector.extract_strided_slice %22 {offsets = [0, 0], sizes = [8, 32], strides = [1, 1]} : vector<8x96xf32> to vector<8x32xf32>
    %26 = vector.extract_strided_slice %24 {offsets = [0, 0], sizes = [8, 32], strides = [1, 1]} : vector<8x96xf32> to vector<8x32xf32>
    %27 = arith.addf %25, %26 : vector<8x32xf32>
    %28 = arith.negf %27 : vector<8x32xf32>
    %29 = math.exp %28 : vector<8x32xf32>
    %cst_11 = arith.constant 1.000000e+00 : f32
    %30 = vector.broadcast %cst_11 : f32 to vector<8x32xf32>
    %31 = arith.addf %30, %29 : vector<8x32xf32>
    %32 = arith.divf %30, %31 : vector<8x32xf32>
    %33 = vector.extract_strided_slice %22 {offsets = [0, 32], sizes = [8, 32], strides = [1, 1]} : vector<8x96xf32> to vector<8x32xf32>
    %34 = vector.extract_strided_slice %24 {offsets = [0, 32], sizes = [8, 32], strides = [1, 1]} : vector<8x96xf32> to vector<8x32xf32>
    %35 = arith.addf %33, %34 : vector<8x32xf32>
    %36 = arith.negf %35 : vector<8x32xf32>
    %37 = math.exp %36 : vector<8x32xf32>
    %cst_12 = arith.constant 1.000000e+00 : f32
    %38 = vector.broadcast %cst_12 : f32 to vector<8x32xf32>
    %39 = arith.addf %38, %37 : vector<8x32xf32>
    %40 = arith.divf %38, %39 : vector<8x32xf32>
    %41 = vector.extract_strided_slice %22 {offsets = [0, 64], sizes = [8, 32], strides = [1, 1]} : vector<8x96xf32> to vector<8x32xf32>
    %42 = vector.extract_strided_slice %24 {offsets = [0, 64], sizes = [8, 32], strides = [1, 1]} : vector<8x96xf32> to vector<8x32xf32>
    %43 = arith.mulf %32, %42 : vector<8x32xf32>
    %44 = arith.addf %41, %43 : vector<8x32xf32>
    %45 = math.tanh %44 : vector<8x32xf32>
    %cst_13 = arith.constant 1.000000e+00 : f32
    %46 = vector.broadcast %cst_13 : f32 to vector<8x32xf32>
    %47 = arith.subf %46, %40 : vector<8x32xf32>
    %48 = arith.mulf %47, %45 : vector<8x32xf32>
    %49 = arith.mulf %40, %21 : vector<8x32xf32>
    %50 = arith.addf %48, %49 : vector<8x32xf32>
    %51 = vector.extract_strided_slice %18 {offsets = [8, 0], sizes = [8, 96], strides = [1, 1]} : vector<32x96xf32> to vector<8x96xf32>
    %cst_14 = arith.constant dense<0.000000e+00> : vector<8x96xf32>
    %52 = tpu.matmul %50, %2, %cst_14 {dimension_numbers = #tpu.dot_dimension_numbers<[1], [0], [0], [1], [0, 0, 1, 1], [], []>} : vector<8x32xf32>, vector<32x96xf32>, vector<8x96xf32> -> vector<8x96xf32>
    %53 = arith.addf %52, %20 : vector<8x96xf32>
    %54 = vector.extract_strided_slice %51 {offsets = [0, 0], sizes = [8, 32], strides = [1, 1]} : vector<8x96xf32> to vector<8x32xf32>
    %55 = vector.extract_strided_slice %53 {offsets = [0, 0], sizes = [8, 32], strides = [1, 1]} : vector<8x96xf32> to vector<8x32xf32>
    %56 = arith.addf %54, %55 : vector<8x32xf32>
    %57 = arith.negf %56 : vector<8x32xf32>
    %58 = math.exp %57 : vector<8x32xf32>
    %cst_15 = arith.constant 1.000000e+00 : f32
    %59 = vector.broadcast %cst_15 : f32 to vector<8x32xf32>
    %60 = arith.addf %59, %58 : vector<8x32xf32>
    %61 = arith.divf %59, %60 : vector<8x32xf32>
    %62 = vector.extract_strided_slice %51 {offsets = [0, 32], sizes = [8, 32], strides = [1, 1]} : vector<8x96xf32> to vector<8x32xf32>
    %63 = vector.extract_strided_slice %53 {offsets = [0, 32], sizes = [8, 32], strides = [1, 1]} : vector<8x96xf32> to vector<8x32xf32>
    %64 = arith.addf %62, %63 : vector<8x32xf32>
    %65 = arith.negf %64 : vector<8x32xf32>
    %66 = math.exp %65 : vector<8x32xf32>
    %cst_16 = arith.constant 1.000000e+00 : f32
    %67 = vector.broadcast %cst_16 : f32 to vector<8x32xf32>
    %68 = arith.addf %67, %66 : vector<8x32xf32>
    %69 = arith.divf %67, %68 : vector<8x32xf32>
    %70 = vector.extract_strided_slice %51 {offsets = [0, 64], sizes = [8, 32], strides = [1, 1]} : vector<8x96xf32> to vector<8x32xf32>
    %71 = vector.extract_strided_slice %53 {offsets = [0, 64], sizes = [8, 32], strides = [1, 1]} : vector<8x96xf32> to vector<8x32xf32>
    %72 = arith.mulf %61, %71 : vector<8x32xf32>
    %73 = arith.addf %70, %72 : vector<8x32xf32>
    %74 = math.tanh %73 : vector<8x32xf32>
    %cst_17 = arith.constant 1.000000e+00 : f32
    %75 = vector.broadcast %cst_17 : f32 to vector<8x32xf32>
    %76 = arith.subf %75, %69 : vector<8x32xf32>
    %77 = arith.mulf %76, %74 : vector<8x32xf32>
    %78 = arith.mulf %69, %50 : vector<8x32xf32>
    %79 = arith.addf %77, %78 : vector<8x32xf32>
    %80 = vector.extract_strided_slice %18 {offsets = [16, 0], sizes = [8, 96], strides = [1, 1]} : vector<32x96xf32> to vector<8x96xf32>
    %cst_18 = arith.constant dense<0.000000e+00> : vector<8x96xf32>
    %81 = tpu.matmul %79, %2, %cst_18 {dimension_numbers = #tpu.dot_dimension_numbers<[1], [0], [0], [1], [0, 0, 1, 1], [], []>} : vector<8x32xf32>, vector<32x96xf32>, vector<8x96xf32> -> vector<8x96xf32>
    %82 = arith.addf %81, %20 : vector<8x96xf32>
    %83 = vector.extract_strided_slice %80 {offsets = [0, 0], sizes = [8, 32], strides = [1, 1]} : vector<8x96xf32> to vector<8x32xf32>
    %84 = vector.extract_strided_slice %82 {offsets = [0, 0], sizes = [8, 32], strides = [1, 1]} : vector<8x96xf32> to vector<8x32xf32>
    %85 = arith.addf %83, %84 : vector<8x32xf32>
    %86 = arith.negf %85 : vector<8x32xf32>
    %87 = math.exp %86 : vector<8x32xf32>
    %cst_19 = arith.constant 1.000000e+00 : f32
    %88 = vector.broadcast %cst_19 : f32 to vector<8x32xf32>
    %89 = arith.addf %88, %87 : vector<8x32xf32>
    %90 = arith.divf %88, %89 : vector<8x32xf32>
    %91 = vector.extract_strided_slice %80 {offsets = [0, 32], sizes = [8, 32], strides = [1, 1]} : vector<8x96xf32> to vector<8x32xf32>
    %92 = vector.extract_strided_slice %82 {offsets = [0, 32], sizes = [8, 32], strides = [1, 1]} : vector<8x96xf32> to vector<8x32xf32>
    %93 = arith.addf %91, %92 : vector<8x32xf32>
    %94 = arith.negf %93 : vector<8x32xf32>
    %95 = math.exp %94 : vector<8x32xf32>
    %cst_20 = arith.constant 1.000000e+00 : f32
    %96 = vector.broadcast %cst_20 : f32 to vector<8x32xf32>
    %97 = arith.addf %96, %95 : vector<8x32xf32>
    %98 = arith.divf %96, %97 : vector<8x32xf32>
    %99 = vector.extract_strided_slice %80 {offsets = [0, 64], sizes = [8, 32], strides = [1, 1]} : vector<8x96xf32> to vector<8x32xf32>
    %100 = vector.extract_strided_slice %82 {offsets = [0, 64], sizes = [8, 32], strides = [1, 1]} : vector<8x96xf32> to vector<8x32xf32>
    %101 = arith.mulf %90, %100 : vector<8x32xf32>
    %102 = arith.addf %99, %101 : vector<8x32xf32>
    %103 = math.tanh %102 : vector<8x32xf32>
    %cst_21 = arith.constant 1.000000e+00 : f32
    %104 = vector.broadcast %cst_21 : f32 to vector<8x32xf32>
    %105 = arith.subf %104, %98 : vector<8x32xf32>
    %106 = arith.mulf %105, %103 : vector<8x32xf32>
    %107 = arith.mulf %98, %79 : vector<8x32xf32>
    %108 = arith.addf %106, %107 : vector<8x32xf32>
    %109 = vector.extract_strided_slice %18 {offsets = [24, 0], sizes = [8, 96], strides = [1, 1]} : vector<32x96xf32> to vector<8x96xf32>
    %cst_22 = arith.constant dense<0.000000e+00> : vector<8x96xf32>
    %110 = tpu.matmul %108, %2, %cst_22 {dimension_numbers = #tpu.dot_dimension_numbers<[1], [0], [0], [1], [0, 0, 1, 1], [], []>} : vector<8x32xf32>, vector<32x96xf32>, vector<8x96xf32> -> vector<8x96xf32>
    %111 = arith.addf %110, %20 : vector<8x96xf32>
    %112 = vector.extract_strided_slice %109 {offsets = [0, 0], sizes = [8, 32], strides = [1, 1]} : vector<8x96xf32> to vector<8x32xf32>
    %113 = vector.extract_strided_slice %111 {offsets = [0, 0], sizes = [8, 32], strides = [1, 1]} : vector<8x96xf32> to vector<8x32xf32>
    %114 = arith.addf %112, %113 : vector<8x32xf32>
    %115 = arith.negf %114 : vector<8x32xf32>
    %116 = math.exp %115 : vector<8x32xf32>
    %cst_23 = arith.constant 1.000000e+00 : f32
    %117 = vector.broadcast %cst_23 : f32 to vector<8x32xf32>
    %118 = arith.addf %117, %116 : vector<8x32xf32>
    %119 = arith.divf %117, %118 : vector<8x32xf32>
    %120 = vector.extract_strided_slice %109 {offsets = [0, 32], sizes = [8, 32], strides = [1, 1]} : vector<8x96xf32> to vector<8x32xf32>
    %121 = vector.extract_strided_slice %111 {offsets = [0, 32], sizes = [8, 32], strides = [1, 1]} : vector<8x96xf32> to vector<8x32xf32>
    %122 = arith.addf %120, %121 : vector<8x32xf32>
    %123 = arith.negf %122 : vector<8x32xf32>
    %124 = math.exp %123 : vector<8x32xf32>
    %cst_24 = arith.constant 1.000000e+00 : f32
    %125 = vector.broadcast %cst_24 : f32 to vector<8x32xf32>
    %126 = arith.addf %125, %124 : vector<8x32xf32>
    %127 = arith.divf %125, %126 : vector<8x32xf32>
    %128 = vector.extract_strided_slice %109 {offsets = [0, 64], sizes = [8, 32], strides = [1, 1]} : vector<8x96xf32> to vector<8x32xf32>
    %129 = vector.extract_strided_slice %111 {offsets = [0, 64], sizes = [8, 32], strides = [1, 1]} : vector<8x96xf32> to vector<8x32xf32>
    %130 = arith.mulf %119, %129 : vector<8x32xf32>
    %131 = arith.addf %128, %130 : vector<8x32xf32>
    %132 = math.tanh %131 : vector<8x32xf32>
    %cst_25 = arith.constant 1.000000e+00 : f32
    %133 = vector.broadcast %cst_25 : f32 to vector<8x32xf32>
    %134 = arith.subf %133, %127 : vector<8x32xf32>
    %135 = arith.mulf %134, %132 : vector<8x32xf32>
    %136 = arith.mulf %127, %108 : vector<8x32xf32>
    %137 = arith.addf %135, %136 : vector<8x32xf32>
    %138 = tpu.concatenate %137, %137 in 0 : vector<8x32xf32>, vector<8x32xf32> -> vector<16x32xf32>
    %c0_26 = arith.constant 0 : index
    %c0_27 = arith.constant 0 : index
    %139 = vector.load %arg5[%c0_26, %c0_27] : memref<16x96xf32, #tpu.memory_space<vmem>>, vector<16x96xf32>
    %cst_28 = arith.constant dense<0.000000e+00> : vector<16x96xf32>
    %140 = tpu.matmul %138, %2, %cst_28 {dimension_numbers = #tpu.dot_dimension_numbers<[1], [0], [0], [1], [0, 0, 1, 1], [], []>} : vector<16x32xf32>, vector<32x96xf32>, vector<16x96xf32> -> vector<16x96xf32>
    %141 = vector.broadcast %6 : vector<1x96xf32> to vector<16x96xf32>
    %142 = arith.addf %140, %141 : vector<16x96xf32>
    %143 = vector.extract_strided_slice %139 {offsets = [0, 0], sizes = [16, 32], strides = [1, 1]} : vector<16x96xf32> to vector<16x32xf32>
    %144 = vector.extract_strided_slice %142 {offsets = [0, 0], sizes = [16, 32], strides = [1, 1]} : vector<16x96xf32> to vector<16x32xf32>
    %145 = arith.addf %143, %144 : vector<16x32xf32>
    %146 = arith.negf %145 : vector<16x32xf32>
    %147 = math.exp %146 : vector<16x32xf32>
    %cst_29 = arith.constant 1.000000e+00 : f32
    %148 = vector.broadcast %cst_29 : f32 to vector<16x32xf32>
    %149 = arith.addf %148, %147 : vector<16x32xf32>
    %150 = arith.divf %148, %149 : vector<16x32xf32>
    %151 = vector.extract_strided_slice %139 {offsets = [0, 32], sizes = [16, 32], strides = [1, 1]} : vector<16x96xf32> to vector<16x32xf32>
    %152 = vector.extract_strided_slice %142 {offsets = [0, 32], sizes = [16, 32], strides = [1, 1]} : vector<16x96xf32> to vector<16x32xf32>
    %153 = arith.addf %151, %152 : vector<16x32xf32>
    %154 = arith.negf %153 : vector<16x32xf32>
    %155 = math.exp %154 : vector<16x32xf32>
    %cst_30 = arith.constant 1.000000e+00 : f32
    %156 = vector.broadcast %cst_30 : f32 to vector<16x32xf32>
    %157 = arith.addf %156, %155 : vector<16x32xf32>
    %158 = arith.divf %156, %157 : vector<16x32xf32>
    %159 = vector.extract_strided_slice %139 {offsets = [0, 64], sizes = [16, 32], strides = [1, 1]} : vector<16x96xf32> to vector<16x32xf32>
    %160 = vector.extract_strided_slice %142 {offsets = [0, 64], sizes = [16, 32], strides = [1, 1]} : vector<16x96xf32> to vector<16x32xf32>
    %161 = arith.mulf %150, %160 : vector<16x32xf32>
    %162 = arith.addf %159, %161 : vector<16x32xf32>
    %163 = math.tanh %162 : vector<16x32xf32>
    %cst_31 = arith.constant 1.000000e+00 : f32
    %164 = vector.broadcast %cst_31 : f32 to vector<16x32xf32>
    %165 = arith.subf %164, %158 : vector<16x32xf32>
    %166 = arith.mulf %165, %163 : vector<16x32xf32>
    %167 = arith.mulf %158, %138 : vector<16x32xf32>
    %168 = arith.addf %166, %167 : vector<16x32xf32>
    %cst_32 = arith.constant dense<0.000000e+00> : vector<16x4xf32>
    %169 = tpu.matmul %168, %3, %cst_32 {dimension_numbers = #tpu.dot_dimension_numbers<[1], [0], [0], [1], [0, 0, 1, 1], [], []>} : vector<16x32xf32>, vector<32x4xf32>, vector<16x4xf32> -> vector<16x4xf32>
    %170 = vector.broadcast %8 : vector<1x4xf32> to vector<16x4xf32>
    %171 = arith.addf %169, %170 : vector<16x4xf32>
    %172 = vector.extract_strided_slice %171 {offsets = [0, 0], sizes = [8, 4], strides = [1, 1]} : vector<16x4xf32> to vector<8x4xf32>
    %173 = vector.extract_strided_slice %171 {offsets = [8, 0], sizes = [8, 4], strides = [1, 1]} : vector<16x4xf32> to vector<8x4xf32>
    %174 = tpu.concatenate %172, %173 in 1 : vector<8x4xf32>, vector<8x4xf32> -> vector<8x8xf32>
    %c0_33 = arith.constant 0 : index
    %c0_34 = arith.constant 0 : index
    %175 = vector.load %arg6[%c0_33, %c0_34] : memref<8x8xf32, #tpu.memory_space<vmem>>, vector<8x8xf32>
    %cst_35 = arith.constant dense<0.000000e+00> : vector<8x8xf32>
    %176 = tpu.matmul %175, %174, %cst_35 {dimension_numbers = #tpu.dot_dimension_numbers<[1], [0], [0], [1], [0, 0, 1, 1], [], []>} : vector<8x8xf32>, vector<8x8xf32>, vector<8x8xf32> -> vector<8x8xf32>
    %c0_36 = arith.constant 0 : index
    %c0_37 = arith.constant 0 : index
    %177 = vector.load %arg7[%c0_36, %c0_37] : memref<8x8xf32, #tpu.memory_space<vmem>>, vector<8x8xf32>
    tpu.vector_store %arg7[%c0_36, %c0_37], %176 {strides = array<i32>} : memref<8x8xf32, #tpu.memory_space<vmem>>, vector<8x8xf32>,
    return
  }
  func.func @transform_0(%arg0: i32) -> (i32, i32) {
    %c0_i32 = arith.constant 0 : i32
    %c0_i32_0 = arith.constant 0 : i32
    %c0_i32_1 = arith.constant 0 : i32
    return %c0_i32, %c0_i32_0 : i32, i32
  }
  func.func @transform_1(%arg0: i32) -> (i32, i32) {
    %c0_i32 = arith.constant 0 : i32
    %c0_i32_0 = arith.constant 0 : i32
    %c0_i32_1 = arith.constant 0 : i32
    return %c0_i32, %c0_i32_0 : i32, i32
  }
  func.func @transform_2(%arg0: i32) -> (i32, i32) {
    %c0_i32 = arith.constant 0 : i32
    %c0_i32_0 = arith.constant 0 : i32
    %c0_i32_1 = arith.constant 0 : i32
    return %c0_i32, %c0_i32_0 : i32, i32
  }
  func.func @transform_3(%arg0: i32) -> (i32, i32) {
    %c0_i32 = arith.constant 0 : i32
    %c0_i32_0 = arith.constant 0 : i32
    %c0_i32_1 = arith.constant 0 : i32
    return %c0_i32, %c0_i32_0 : i32, i32
  }
  func.func @transform_4(%arg0: i32) -> (i32, i32) {
    %c0_i32 = arith.constant 0 : i32
    %c0_i32_0 = arith.constant 0 : i32
    %c0_i32_1 = arith.constant 0 : i32
    return %c0_i32, %c0_i32_0 : i32, i32
  }
  func.func @transform_5(%arg0: i32) -> (i32, i32) {
    %c0_i32 = arith.constant 0 : i32
    %c0_i32_0 = arith.constant 0 : i32
    %c0_i32_1 = arith.constant 0 : i32
    return %c0_i32, %c0_i32_0 : i32, i32
  }
  func.func @transform_6(%arg0: i32) -> (i32, i32) {
    %c0_i32 = arith.constant 0 : i32
    %c0_i32_0 = arith.constant 0 : i32
    %c0_i32_1 = arith.constant 0 : i32
    return %c0_i32, %c0_i32_0 : i32, i32
  }
}

</mosaic_0001>

<llo_original>
// kernel: segrnn_forward.1
$region0: #{segrnn_forward.1}
  #allocation0 [shape = 'u32[]', space=smem, size = 0x4, offset = 0x4, fixed_abs, tag = 'smem constant byte address 0x4 - core index']
  #allocation1 [shape = 'u32[72,128]{1,0:T(1,128)}', space=vmem, size = 0x9000, scoped, tag = 'internal scratch']
  %s0 = inlined_call_operand.vmem [shape: f32[32,4], index: 0, kind: input, shape index: {}]
  %s1 = inlined_call_operand.vmem [shape: f32[4,32], index: 1, kind: input, shape index: {}]
  %s2 = inlined_call_operand.vmem [shape: f32[96,96], index: 2, kind: input, shape index: {}]
  %s3 = inlined_call_operand.vmem [shape: f32[4,96], index: 3, kind: input, shape index: {}]
  %s4 = inlined_call_operand.vmem [shape: f32[16,96], index: 4, kind: input, shape index: {}]
  %s5 = inlined_call_operand.vmem [shape: f32[8,8], index: 5, kind: input, shape index: {}]
  %s6 = inlined_call_operand.vmem [shape: f32[8,8], index: 6, kind: output, shape index: {}]
  %s7 = sld [smem:[#allocation0]]
  $region34: #{segrnn_forward.1} parent=0
    _
  %s9 = ssub.s32 1, %s7
  %s10 = scalar_select 0, %s9, %s7
  // Predicated region
  $region2: #{segrnn_forward.1} parent=0 // pred_check
    _
  $region3: #{segrnn_forward.1} parent=0 // pred_check_branch
    %12 = sbr.rel (0) target = $region5
  $region4: #{segrnn_forward.1} parent=0 // pred_region
    _
  $region5: #{segrnn_forward.1} parent=0 // pred_fallthru
    _
  // Predicated region
  $region6: #{segrnn_forward.1} parent=0 // pred_check
    _
  $region7: #{segrnn_forward.1} parent=0 // pred_check_branch
    %14 = sbr.rel (0) target = $region9
  $region8: #{segrnn_forward.1} parent=0 // pred_region
    _
  $region9: #{segrnn_forward.1} parent=0 // pred_fallthru
    _
  // Predicated region
  $region10: #{segrnn_forward.1} parent=0 // pred_check
    _
  $region11: #{segrnn_forward.1} parent=0 // pred_check_branch
    %16 = sbr.rel (0) target = $region13
  $region12: #{segrnn_forward.1} parent=0 // pred_region
    _
  $region13: #{segrnn_forward.1} parent=0 // pred_fallthru
    _
  // Predicated region
  $region14: #{segrnn_forward.1} parent=0 // pred_check
    _
  $region15: #{segrnn_forward.1} parent=0 // pred_check_branch
    %18 = sbr.rel (0) target = $region17
  $region16: #{segrnn_forward.1} parent=0 // pred_region
    _
  $region17: #{segrnn_forward.1} parent=0 // pred_fallthru
    _
  // Predicated region
  $region18: #{segrnn_forward.1} parent=0 // pred_check
    _
  $region19: #{segrnn_forward.1} parent=0 // pred_check_branch
    %20 = sbr.rel (0) target = $region21
  $region20: #{segrnn_forward.1} parent=0 // pred_region
    _
  $region21: #{segrnn_forward.1} parent=0 // pred_fallthru
    _
  // Predicated region
  $region22: #{segrnn_forward.1} parent=0 // pred_check
    _
  $region23: #{segrnn_forward.1} parent=0 // pred_check_branch
    %22 = sbr.rel (0) target = $region25
  $region24: #{segrnn_forward.1} parent=0 // pred_region
    _
  $region25: #{segrnn_forward.1} parent=0 // pred_fallthru
    _
  %v23 = vld [vmem:[%s2] sm:$0xff]
  %v24 = vld [vmem:[%s2 + $0x8] sm:$0xff]
  %v25 = vld [vmem:[%s2 + $0x10] sm:$0xff]
  %v26 = vld [vmem:[%s2 + $0x18] sm:$0xff]
  %v27 = vld [vmem:[%s2 + $0x20] sm:$0xff]
  %v28 = vld [vmem:[%s2 + $0x28] sm:$0xff]
  %v29 = vld [vmem:[%s2 + $0x30] sm:$0xff]
  %v30 = vld [vmem:[%s2 + $0x38] sm:$0xff]
  %v31 = vld [vmem:[%s2 + $0x40] sm:$0xff]
  %v32 = vld [vmem:[%s2 + $0x48] sm:$0xff]
  %v33 = vld [vmem:[%s2 + $0x50] sm:$0xff]
  %v34 = vld [vmem:[%s2 + $0x58] sm:$0xff]
  %v35 = vld [vmem:[%s3] sm:$0xf]
  %v36 = vld [vmem:[%s0] sm:$0xff]
  %v37 = vld [vmem:[%s0 + $0x8] sm:$0xff]
  %v38 = vld [vmem:[%s0 + $0x10] sm:$0xff]
  %v39 = vld [vmem:[%s0 + $0x18] sm:$0xff]
  %v40 = vld [vmem:[%s1] sm:$0xf]
  %v41 = vperm.slane %v35, 2
  %vm42 = vcmask 31744
  %v44 = vsel %vm42, %v36, 0
  %v47 = vsel %vm42, %v37, 0
  %v50 = vsel %vm42, %v38, 0
  %v53 = vsel %vm42, %v39, 0
  %vm55 = vcmask 1043456
  %v57 = vsel %vm55, %v40, 0
  %59 = vmatpush.msra.mxu0 0.0
  %60 = vmatpush.msra.mxu0 0.0
  %61 = vmatpush.msra.mxu0 0.0
  %62 = vmatpush.msra.mxu0 0.0
  %63 = vmatpush.msra.mxu0 0.0
  %64 = vmatpush.msra.mxu0 0.0
  %65 = vmatpush.msra.mxu0 0.0
  %66 = vmatpush.msra.mxu0 0.0
  %67 = vmatpush.msra.mxu0 0.0
  %68 = vmatpush.msra.mxu0 0.0
  %69 = vmatpush.msra.mxu0 0.0
  %70 = vmatpush.msra.mxu0 0.0
  %71 = vmatpush.msra.mxu0 0.0
  %72 = vmatpush.msra.mxu0 0.0
  %73 = vmatpush.msra.mxu0 0.0
  %74 = vmatpush.msra.mxu0 %v57
  %75 = vmatmul.f32.gmra.mxu0 %v44
  %v76 = vpop.f32.mrf.mxu0
  %v77 = vadd.f32 %v41, %v76
  %78 = vmatmul.f32.gmra.mxu0 %v47
  %v79 = vpop.f32.mrf.mxu0
  %v80 = vadd.f32 %v41, %v79
  %81 = vmatmul.f32.gmra.mxu0 %v50
  %v82 = vpop.f32.mrf.mxu0
  %v83 = vadd.f32 %v41, %v82
  %84 = vmatmul.f32.gmra.mxu0 %v53
  %v85 = vpop.f32.mrf.mxu0
  %v86 = vadd.f32 %v41, %v85
  %87 = vdwg.mxu0
  %v88 = vmax.f32 %v77, 0.0
  %v89 = vmax.f32 %v80, 0.0
  %v90 = vmax.f32 %v83, 0.0
  %v91 = vmax.f32 %v86, 0.0
  %v92 = vperm.slane %v35, 0
  %vm93 = vcmask 261120
  %v95 = vsel %vm93, %v88, 0
  %v98 = vsel %vm93, %v89, 0
  %v101 = vsel %vm93, %v90, 0
  %v104 = vsel %vm93, %v91, 0
  %106 = vmatpush.msra.mxu0 0.0
  %107 = vmatpush.msra.mxu0 0.0
  %108 = vmatpush.msra.mxu0 0.0
  %109 = vmatpush.msra.mxu0 0.0
  %110 = vmatpush.msra.mxu0 0.0
  %111 = vmatpush.msra.mxu0 0.0
  %112 = vmatpush.msra.mxu0 0.0
  %113 = vmatpush.msra.mxu0 0.0
  %114 = vmatpush.msra.mxu0 0.0
  %115 = vmatpush.msra.mxu0 0.0
  %116 = vmatpush.msra.mxu0 0.0
  %117 = vmatpush.msra.mxu0 0.0
  %118 = vmatpush.msra.mxu0 %v26
  %119 = vmatpush.msra.mxu0 %v25
  %120 = vmatpush.msra.mxu0 %v24
  %121 = vmatpush.msra.mxu0 %v23
  %122 = vmatmul.f32.gmra.mxu0 %v95
  %v123 = vpop.f32.mrf.mxu0
  %v124 = vadd.f32 %v92, %v123
  %125 = vmatmul.f32.gmra.mxu0 %v98
  %v126 = vpop.f32.mrf.mxu0
  %v127 = vadd.f32 %v92, %v126
  %128 = vmatmul.f32.gmra.mxu0 %v101
  %v129 = vpop.f32.mrf.mxu0
  %v130 = vadd.f32 %v92, %v129
  %131 = vmatmul.f32.gmra.mxu0 %v104
  %v132 = vpop.f32.mrf.mxu0
  %v133 = vadd.f32 %v92, %v132
  %134 = vdwg.mxu0
  %v135 = vperm.slane %v35, 1
  %v137 = vsel %vm93, 0.0, 0
  %139 = vmatpush.msra.mxu0 0.0
  %140 = vmatpush.msra.mxu0 0.0
  %141 = vmatpush.msra.mxu0 0.0
  %142 = vmatpush.msra.mxu0 0.0
  %143 = vmatpush.msra.mxu0 0.0
  %144 = vmatpush.msra.mxu0 0.0
  %145 = vmatpush.msra.mxu0 0.0
  %146 = vmatpush.msra.mxu0 0.0
  %147 = vmatpush.msra.mxu0 0.0
  %148 = vmatpush.msra.mxu0 0.0
  %149 = vmatpush.msra.mxu0 0.0
  %150 = vmatpush.msra.mxu0 0.0
  %151 = vmatpush.msra.mxu0 %v30
  %152 = vmatpush.msra.mxu0 %v29
  %153 = vmatpush.msra.mxu0 %v28
  %154 = vmatpush.msra.mxu0 %v27
  %155 = vmatmul.f32.gmra.mxu0 %v137
  %v156 = vpop.f32.mrf.mxu0
  %v157 = vadd.f32 %v135, %v156
  %158 = vdwg.mxu0
  %v159 = vadd.f32 %v124, %v157
  %v160 = vxor.u32 %v159, 2147483648
  %v161 = vmul.f32 %v160, 1.442695
  %v162 = vpow.pop %v161
  %v163 = vadd.f32 %v162, 1.0
  %v164 = vrcp.pop %v163
  %v165 = vmul.f32 %v163, %v164
  %v166 = vsub.f32 1.0, %v165
  %v167 = vmul.f32 %v164, %v166
  %v168 = vadd.f32 %v164, %v167
  %vm169 = vweird.f32 %v163
  %vm170 = vweird.f32 %v164
  %vm171 = vmor %vm169, %vm170
  %v172 = vsel %vm171, %v164, %v168
  %v173 = vand.u32 2147483647, %v163
  %vm174 = vcmp.eq.f32.partialorder %v173, 8.507059e+37
  %v175 = vand.u32 %v163, 2147483648
  %v176 = vor.u32 1.1754944e-38, %v175
  %v177 = vsel %vm174, %v176, %v172
  %v178 = vmul.f32 1.0, %v177
  %180 = vrot.lane.b32.xlu0 %v157, 64
  %v181 = vpop.permute.xlu0 %180
  %v183 = vmul.f32 %v178, %v181
  %185 = vrot.lane.b32.xlu0 %v183, 64
  %v186 = vpop.permute.xlu0 %185
  %v188 = vadd.f32 %v124, %v186
  %v189 = vtanh.pop %v188
  %v190 = vsub.f32 1.0, %v178
  %192 = vrot.lane.b32.xlu0 %v189, 96
  %v193 = vpop.permute.xlu0 %192
  %v195 = vmul.f32 %v190, %v193
  %v196 = vmul.f32 %v178, 0.0
  %v197 = vadd.f32 %v195, %v196
  %199 = vrot.lane.b32.xlu0 %v197, 96
  %v200 = vpop.permute.xlu0 %199
  %v201 = vsel %vm93, %v200, 0
  %203 = vmatpush.msra.mxu0 0.0
  %204 = vmatpush.msra.mxu0 0.0
  %205 = vmatpush.msra.mxu0 0.0
  %206 = vmatpush.msra.mxu0 0.0
  %207 = vmatpush.msra.mxu0 0.0
  %208 = vmatpush.msra.mxu0 0.0
  %209 = vmatpush.msra.mxu0 0.0
  %210 = vmatpush.msra.mxu0 0.0
  %211 = vmatpush.msra.mxu0 0.0
  %212 = vmatpush.msra.mxu0 0.0
  %213 = vmatpush.msra.mxu0 0.0
  %214 = vmatpush.msra.mxu0 0.0
  %215 = vmatpush.msra.mxu0 %v30
  %216 = vmatpush.msra.mxu0 %v29
  %217 = vmatpush.msra.mxu0 %v28
  %218 = vmatpush.msra.mxu0 %v27
  %219 = vmatmul.f32.gmra.mxu0 %v201
  %v220 = vpop.f32.mrf.mxu0
  %v221 = vadd.f32 %v135, %v220
  %222 = vdwg.mxu0
  %v223 = vadd.f32 %v127, %v221
  %v224 = vxor.u32 %v223, 2147483648
  %v225 = vmul.f32 %v224, 1.442695
  %v226 = vpow.pop %v225
  %v227 = vadd.f32 %v226, 1.0
  %v228 = vrcp.pop %v227
  %v229 = vmul.f32 %v227, %v228
  %v230 = vsub.f32 1.0, %v229
  %v231 = vmul.f32 %v228, %v230
  %v232 = vadd.f32 %v228, %v231
  %vm233 = vweird.f32 %v227
  %vm234 = vweird.f32 %v228
  %vm235 = vmor %vm233, %vm234
  %v236 = vsel %vm235, %v228, %v232
  %v237 = vand.u32 2147483647, %v227
  %vm238 = vcmp.eq.f32.partialorder %v237, 8.507059e+37
  %v239 = vand.u32 %v227, 2147483648
  %v240 = vor.u32 1.1754944e-38, %v239
  %v241 = vsel %vm238, %v240, %v236
  %v242 = vmul.f32 1.0, %v241
  %244 = vrot.lane.b32.xlu0 %v221, 64
  %v245 = vpop.permute.xlu0 %244
  %v247 = vmul.f32 %v242, %v245
  %249 = vrot.lane.b32.xlu0 %v247, 64
  %v250 = vpop.permute.xlu0 %249
  %v252 = vadd.f32 %v127, %v250
  %v253 = vtanh.pop %v252
  %v254 = vsub.f32 1.0, %v242
  %256 = vrot.lane.b32.xlu0 %v253, 96
  %v257 = vpop.permute.xlu0 %256
  %v259 = vmul.f32 %v254, %v257
  %v260 = vmul.f32 %v242, %v197
  %v261 = vadd.f32 %v259, %v260
  %263 = vrot.lane.b32.xlu0 %v261, 96
  %v264 = vpop.permute.xlu0 %263
  %v265 = vsel %vm93, %v264, 0
  %267 = vmatpush.msra.mxu0 0.0
  %268 = vmatpush.msra.mxu0 0.0
  %269 = vmatpush.msra.mxu0 0.0
  %270 = vmatpush.msra.mxu0 0.0
  %271 = vmatpush.msra.mxu0 0.0
  %272 = vmatpush.msra.mxu0 0.0
  %273 = vmatpush.msra.mxu0 0.0
  %274 = vmatpush.msra.mxu0 0.0
  %275 = vmatpush.msra.mxu0 0.0
  %276 = vmatpush.msra.mxu0 0.0
  %277 = vmatpush.msra.mxu0 0.0
  %278 = vmatpush.msra.mxu0 0.0
  %279 = vmatpush.msra.mxu0 %v30
  %280 = vmatpush.msra.mxu0 %v29
  %281 = vmatpush.msra.mxu0 %v28
  %282 = vmatpush.msra.mxu0 %v27
  %283 = vmatmul.f32.gmra.mxu0 %v265
  %v284 = vpop.f32.mrf.mxu0
  %v285 = vadd.f32 %v135, %v284
  %286 = vdwg.mxu0
  %v287 = vadd.f32 %v130, %v285
  %v288 = vxor.u32 %v287, 2147483648
  %v289 = vmul.f32 %v288, 1.442695
  %v290 = vpow.pop %v289
  %v291 = vadd.f32 %v290, 1.0
  %v292 = vrcp.pop %v291
  %v293 = vmul.f32 %v291, %v292
  %v294 = vsub.f32 1.0, %v293
  %v295 = vmul.f32 %v292, %v294
  %v296 = vadd.f32 %v292, %v295
  %vm297 = vweird.f32 %v291
  %vm298 = vweird.f32 %v292
  %vm299 = vmor %vm297, %vm298
  %v300 = vsel %vm299, %v292, %v296
  %v301 = vand.u32 2147483647, %v291
  %vm302 = vcmp.eq.f32.partialorder %v301, 8.507059e+37
  %v303 = vand.u32 %v291, 2147483648
  %v304 = vor.u32 1.1754944e-38, %v303
  %v305 = vsel %vm302, %v304, %v300
  %v306 = vmul.f32 1.0, %v305
  %308 = vrot.lane.b32.xlu0 %v285, 64
  %v309 = vpop.permute.xlu0 %308
  %v311 = vmul.f32 %v306, %v309
  %313 = vrot.lane.b32.xlu0 %v311, 64
  %v314 = vpop.permute.xlu0 %313
  %v316 = vadd.f32 %v130, %v314
  %v317 = vtanh.pop %v316
  %v318 = vsub.f32 1.0, %v306
  %320 = vrot.lane.b32.xlu0 %v317, 96
  %v321 = vpop.permute.xlu0 %320
  %v323 = vmul.f32 %v318, %v321
  %v324 = vmul.f32 %v306, %v261
  %v325 = vadd.f32 %v323, %v324
  %327 = vrot.lane.b32.xlu0 %v325, 96
  %v328 = vpop.permute.xlu0 %327
  %v329 = vsel %vm93, %v328, 0
  %331 = vmatpush.msra.mxu0 0.0
  %332 = vmatpush.msra.mxu0 0.0
  %333 = vmatpush.msra.mxu0 0.0
  %334 = vmatpush.msra.mxu0 0.0
  %335 = vmatpush.msra.mxu0 0.0
  %336 = vmatpush.msra.mxu0 0.0
  %337 = vmatpush.msra.mxu0 0.0
  %338 = vmatpush.msra.mxu0 0.0
  %339 = vmatpush.msra.mxu0 0.0
  %340 = vmatpush.msra.mxu0 0.0
  %341 = vmatpush.msra.mxu0 0.0
  %342 = vmatpush.msra.mxu0 0.0
  %343 = vmatpush.msra.mxu0 %v30
  %344 = vmatpush.msra.mxu0 %v29
  %345 = vmatpush.msra.mxu0 %v28
  %346 = vmatpush.msra.mxu0 %v27
  %347 = vmatmul.f32.gmra.mxu0 %v329
  %v348 = vpop.f32.mrf.mxu0
  %v349 = vadd.f32 %v135, %v348
  %350 = vdwg.mxu0
  %v351 = vadd.f32 %v133, %v349
  %v352 = vxor.u32 %v351, 2147483648
  %v353 = vmul.f32 %v352, 1.442695
  %v354 = vpow.pop %v353
  %v355 = vadd.f32 %v354, 1.0
  %v356 = vrcp.pop %v355
  %v357 = vmul.f32 %v355, %v356
  %v358 = vsub.f32 1.0, %v357
  %v359 = vmul.f32 %v356, %v358
  %v360 = vadd.f32 %v356, %v359
  %vm361 = vweird.f32 %v355
  %vm362 = vweird.f32 %v356
  %vm363 = vmor %vm361, %vm362
  %v364 = vsel %vm363, %v356, %v360
  %v365 = vand.u32 2147483647, %v355
  %vm366 = vcmp.eq.f32.partialorder %v365, 8.507059e+37
  %v367 = vand.u32 %v355, 2147483648
  %v368 = vor.u32 1.1754944e-38, %v367
  %v369 = vsel %vm366, %v368, %v364
  %v370 = vmul.f32 1.0, %v369
  %372 = vrot.lane.b32.xlu0 %v349, 64
  %v373 = vpop.permute.xlu0 %372
  %v375 = vmul.f32 %v370, %v373
  %377 = vrot.lane.b32.xlu0 %v375, 64
  %v378 = vpop.permute.xlu0 %377
  %v380 = vadd.f32 %v133, %v378
  %v381 = vtanh.pop %v380
  %v382 = vsub.f32 1.0, %v370
  %384 = vrot.lane.b32.xlu0 %v381, 96
  %v385 = vpop.permute.xlu0 %384
  %v387 = vmul.f32 %v382, %v385
  %v388 = vmul.f32 %v370, %v325
  %v389 = vadd.f32 %v387, %v388
  %v390 = vld [vmem:[%s4] sm:$0xff]
  %v391 = vld [vmem:[%s4 + $0x8] sm:$0xff]
  %393 = vrot.lane.b32.xlu0 %v389, 96
  %v394 = vpop.permute.xlu0 %393
  %v395 = vsel %vm93, %v394, 0
  %397 = vmatpush.msra.mxu0 0.0
  %398 = vmatpush.msra.mxu0 0.0
  %399 = vmatpush.msra.mxu0 0.0
  %400 = vmatpush.msra.mxu0 0.0
  %401 = vmatpush.msra.mxu0 0.0
  %402 = vmatpush.msra.mxu0 0.0
  %403 = vmatpush.msra.mxu0 0.0
  %404 = vmatpush.msra.mxu0 0.0
  %405 = vmatpush.msra.mxu0 0.0
  %406 = vmatpush.msra.mxu0 0.0
  %407 = vmatpush.msra.mxu0 0.0
  %408 = vmatpush.msra.mxu0 0.0
  %409 = vmatpush.msra.mxu0 %v30
  %410 = vmatpush.msra.mxu0 %v29
  %411 = vmatpush.msra.mxu0 %v28
  %412 = vmatpush.msra.mxu0 %v27
  %413 = vmatmul.f32.gmra.mxu0 %v395
  %v414 = vpop.f32.mrf.mxu0
  %v415 = vadd.f32 %v135, %v414
  %416 = vmatmul.f32.gmra.mxu0 %v395
  %v417 = vpop.f32.mrf.mxu0
  %v418 = vadd.f32 %v135, %v417
  %419 = vdwg.mxu0
  %v420 = vadd.f32 %v390, %v415
  %v421 = vadd.f32 %v391, %v418
  %v422 = vxor.u32 %v420, 2147483648
  %v423 = vxor.u32 %v421, 2147483648
  %v424 = vmul.f32 %v422, 1.442695
  %v425 = vpow.pop %v424
  %v426 = vmul.f32 %v423, 1.442695
  %v427 = vpow.pop %v426
  %v428 = vadd.f32 %v425, 1.0
  %v429 = vadd.f32 %v427, 1.0
  %v430 = vrcp.pop %v428
  %v431 = vmul.f32 %v428, %v430
  %v432 = vsub.f32 1.0, %v431
  %v433 = vmul.f32 %v430, %v432
  %v434 = vadd.f32 %v430, %v433
  %vm435 = vweird.f32 %v428
  %vm436 = vweird.f32 %v430
  %vm437 = vmor %vm435, %vm436
  %v438 = vsel %vm437, %v430, %v434
  %v439 = vand.u32 2147483647, %v428
  %vm440 = vcmp.eq.f32.partialorder %v439, 8.507059e+37
  %v441 = vand.u32 %v428, 2147483648
  %v442 = vor.u32 1.1754944e-38, %v441
  %v443 = vsel %vm440, %v442, %v438
  %v444 = vmul.f32 1.0, %v443
  %v445 = vrcp.pop %v429
  %v446 = vmul.f32 %v429, %v445
  %v447 = vsub.f32 1.0, %v446
  %v448 = vmul.f32 %v445, %v447
  %v449 = vadd.f32 %v445, %v448
  %vm450 = vweird.f32 %v429
  %vm451 = vweird.f32 %v445
  %vm452 = vmor %vm450, %vm451
  %v453 = vsel %vm452, %v445, %v449
  %v454 = vand.u32 2147483647, %v429
  %vm455 = vcmp.eq.f32.partialorder %v454, 8.507059e+37
  %v456 = vand.u32 %v429, 2147483648
  %v457 = vor.u32 1.1754944e-38, %v456
  %v458 = vsel %vm455, %v457, %v453
  %v459 = vmul.f32 1.0, %v458
  %462 = vrot.lane.b32.xlu0 %v415, 64
  %v463 = vpop.permute.xlu0 %462
  %464 = vrot.lane.b32.xlu0 %v418, 64
  %v465 = vpop.permute.xlu0 %464
  %v468 = vmul.f32 %v444, %v463
  %v469 = vmul.f32 %v459, %v465
  %472 = vrot.lane.b32.xlu0 %v468, 64
  %v473 = vpop.permute.xlu0 %472
  %474 = vrot.lane.b32.xlu0 %v469, 64
  %v475 = vpop.permute.xlu0 %474
  %v478 = vadd.f32 %v390, %v473
  %v479 = vadd.f32 %v391, %v475
  %v480 = vtanh.pop %v478
  %v481 = vtanh.pop %v479
  %v482 = vsub.f32 1.0, %v444
  %v483 = vsub.f32 1.0, %v459
  %486 = vrot.lane.b32.xlu0 %v480, 96
  %v487 = vpop.permute.xlu0 %486
  %488 = vrot.lane.b32.xlu0 %v481, 96
  %v489 = vpop.permute.xlu0 %488
  %v492 = vmul.f32 %v482, %v487
  %v493 = vmul.f32 %v483, %v489
  %v494 = vmul.f32 %v444, %v389
  %v495 = vmul.f32 %v459, %v389
  %v496 = vadd.f32 %v492, %v494
  %v497 = vadd.f32 %v493, %v495
  %v498 = vperm.slane %v35, 3
  %501 = vrot.lane.b32.xlu0 %v496, 96
  %v502 = vpop.permute.xlu0 %501
  %503 = vrot.lane.b32.xlu0 %v497, 96
  %v504 = vpop.permute.xlu0 %503
  %v505 = vsel %vm93, %v502, 0
  %v507 = vsel %vm93, %v504, 0
  %509 = vmatpush.msra.mxu0 0.0
  %510 = vmatpush.msra.mxu0 0.0
  %511 = vmatpush.msra.mxu0 0.0
  %512 = vmatpush.msra.mxu0 0.0
  %513 = vmatpush.msra.mxu0 0.0
  %514 = vmatpush.msra.mxu0 0.0
  %515 = vmatpush.msra.mxu0 0.0
  %516 = vmatpush.msra.mxu0 0.0
  %517 = vmatpush.msra.mxu0 0.0
  %518 = vmatpush.msra.mxu0 0.0
  %519 = vmatpush.msra.mxu0 0.0
  %520 = vmatpush.msra.mxu0 0.0
  %521 = vmatpush.msra.mxu0 %v34
  %522 = vmatpush.msra.mxu0 %v33
  %523 = vmatpush.msra.mxu0 %v32
  %524 = vmatpush.msra.mxu0 %v31
  %525 = vmatmul.f32.gmra.mxu0 %v505
  %v526 = vpop.f32.mrf.mxu0
  %v527 = vadd.f32 %v498, %v526
  %528 = vmatmul.f32.gmra.mxu0 %v507
  %v529 = vpop.f32.mrf.mxu0
  %v530 = vadd.f32 %v498, %v529
  %531 = vdwg.mxu0
  %533 = vrot.lane.b32.xlu0 %v530, 4
  %v534 = vpop.permute.xlu0 %533
  %v536 = vsel %vm42, %v527, %v534
  %v537 = vld [vmem:[%s5] sm:$0xff]
  %vm538 = vcmask 64512
  %v540 = vsel %vm538, %v537, 0
  %542 = vmatpush.msra.mxu0 0.0
  %543 = vmatpush.msra.mxu0 0.0
  %544 = vmatpush.msra.mxu0 0.0
  %545 = vmatpush.msra.mxu0 0.0
  %546 = vmatpush.msra.mxu0 0.0
  %547 = vmatpush.msra.mxu0 0.0
  %548 = vmatpush.msra.mxu0 0.0
  %549 = vmatpush.msra.mxu0 0.0
  %550 = vmatpush.msra.mxu0 0.0
  %551 = vmatpush.msra.mxu0 0.0
  %552 = vmatpush.msra.mxu0 0.0
  %553 = vmatpush.msra.mxu0 0.0
  %554 = vmatpush.msra.mxu0 0.0
  %555 = vmatpush.msra.mxu0 0.0
  %556 = vmatpush.msra.mxu0 0.0
  %557 = vmatpush.msra.mxu0 %v536
  %558 = vmatmul.f32.gmra.mxu0 %v540
  %v559 = vpop.f32.mrf.mxu0
  %v560 = vadd.f32 0.0, %v559
  %561 = vdwg.mxu0
  %562 = vst.msk [vmem:[%s6] sm:$0xff] %vm538, %v560
  // Predicated region
  $region26: #{segrnn_forward.1} parent=0 // pred_check
    _
  $region27: #{segrnn_forward.1} parent=0 // pred_check_branch
    %564 = sbr.rel (0) target = $region29
  $region28: #{segrnn_forward.1} parent=0 // pred_region
    _
  $region29: #{segrnn_forward.1} parent=0 // pred_fallthru
    _
  // Predicated region
  $region30: #{segrnn_forward.1} parent=0 // pred_check
    _
  $region31: #{segrnn_forward.1} parent=0 // pred_check_branch
    %566 = sbr.rel (0) target = $region33
  $region32: #{segrnn_forward.1} parent=0 // pred_region
    _
  $region33: #{segrnn_forward.1} parent=0 // pred_fallthru
    _

</llo_original>
